<compile_context>
chip_gen: v7x
topology: tpu7x:2x2x1
jax: 0.10.0
libtpu: 0.0.40
codegen_flags: <defaults>
</compile_context>

<pallas_src>
import math
import functools

import jax
import jax.numpy as jnp
from jax import lax
from jax.experimental import pallas as pl
from jax.experimental.pallas import tpu as pltpu

INPUT_DIM = 12
H1 = 32
H2 = 16
OUTPUT_DIM = 5

_LANE = 128          # lane width / batch-tile alignment
_TILE_B_MAX = 2048   # batch columns per grid step (tiny VMEM footprint: <1 MiB)


def _round_up(n, m):
    return ((n + m - 1) // m) * m


def _gelu_exact(x):
    # PyTorch nn.GELU() default: exact erf formulation.
    return 0.5 * x * (1.0 + lax.erf(x * (1.0 / math.sqrt(2.0))))


def _mlp_kernel(xT_ref, w1_ref, b1_ref, w2_ref, b2_ref, w3_ref, b3_ref, oT_ref):
    xT = xT_ref[...]                                   # (12, TB) f32, batch on lanes

    # Layer 1: Linear(12, 32) + GELU   -> (32, TB)
    h1 = jnp.dot(w1_ref[...], xT, preferred_element_type=jnp.float32) + b1_ref[...]
    h1 = _gelu_exact(h1)

    # Layer 2: Linear(32, 16) + GELU   -> (16, TB)
    h2 = jnp.dot(w2_ref[...], h1, preferred_element_type=jnp.float32) + b2_ref[...]
    h2 = _gelu_exact(h2)

    # Layer 3: Linear(16, 5)           -> (5, TB), lane-dense store
    out = jnp.dot(w3_ref[...], h2, preferred_element_type=jnp.float32) + b3_ref[...]
    oT_ref[...] = out.astype(oT_ref.dtype)


@functools.partial(jax.jit, static_argnames=("tile_b",))
def lipschitz_nn_forward(x, w1, b1, w2, b2, w3, b3, *, tile_b=None):
    """x: (B, 12) f32. Weights in PyTorch layout (out, in); biases (out, 1)."""
    B = x.shape[0]
    if tile_b is None:
        tile_b = min(_round_up(B, _LANE), _TILE_B_MAX)
    B_pad = _round_up(B, tile_b)

    # Transposed + lane-padded layout: batch on the lane (last) dimension.
    xT = jnp.zeros((INPUT_DIM, B_pad), x.dtype).at[:, :B].set(x.T)

    const = lambda shape: pl.BlockSpec(shape, lambda i: (0, 0))

    outT = pl.pallas_call(
        _mlp_kernel,
        out_shape=jax.ShapeDtypeStruct((OUTPUT_DIM, B_pad), jnp.float32),
        grid=(B_pad // tile_b,),
        in_specs=[
            pl.BlockSpec((INPUT_DIM, tile_b), lambda i: (0, i)),
            const((H1, INPUT_DIM)), const((H1, 1)),
            const((H2, H1)),        const((H2, 1)),
            const((OUTPUT_DIM, H2)), const((OUTPUT_DIM, 1)),
        ],
        out_specs=pl.BlockSpec((OUTPUT_DIM, tile_b), lambda i: (0, i)),
        compiler_params=pltpu.CompilerParams(
            dimension_semantics=("parallel",),
            vmem_limit_bytes=32 * 1024 * 1024,
        ),
    )(xT, w1, b1, w2, b2, w3, b3)

    # Strip batch padding and return in the PyTorch (B, 5) orientation.
    return outT[:, :B].T


def init_params(key):
    """PyTorch nn.Linear-style init (uniform +/- 1/sqrt(fan_in)).

    Weights stored (out_features, in_features); biases (out_features, 1).
    """
    dims = [(INPUT_DIM, H1), (H1, H2), (H2, OUTPUT_DIM)]
    params = []
    for (fan_in, fan_out) in dims:
        key, kw, kb = jax.random.split(key, 3)
        bound = 1.0 / math.sqrt(fan_in)
        w = jax.random.uniform(kw, (fan_out, fan_in), jnp.float32, -bound, bound)
        b = jax.random.uniform(kb, (fan_out, 1), jnp.float32, -bound, bound)
        params += [w, b]
    return params


def reference_forward(x, w1, b1, w2, b2, w3, b3):
    h1 = jax.nn.gelu(x @ w1.T + b1.T, approximate=False)
    h2 = jax.nn.gelu(h1 @ w2.T + b2.T, approximate=False)
    return h2 @ w3.T + b3.T


# TODO(synk): lip_loss requires autograd Jacobians of the net w.r.t. inputs and
# sklearn scaler state; it is a training-time loss, not part of forward(), so
# it is not implemented as a Pallas kernel here.

if __name__ == "__main__":
    key = jax.random.PRNGKey(0)
    key, kx, kx2 = jax.random.split(key, 3)
    w1, b1, w2, b2, w3, b3 = init_params(key)

    # Small primary test (batch=8): single 128-wide batch tile, grid=(1,).
    batch = 8
    x = jax.random.normal(kx, (batch, INPUT_DIM), jnp.float32)
    out = lipschitz_nn_forward(x, w1, b1, w2, b2, w3, b3)
    out = jax.block_until_ready(out)
    ref = reference_forward(x, w1, b1, w2, b2, w3, b3)
    assert out.shape == (batch, OUTPUT_DIM)
    assert jnp.allclose(out, ref, atol=1e-5, rtol=1e-5), (
        f"mismatch: max abs err {jnp.max(jnp.abs(out - ref))}")

    # Secondary test exercising the multi-tile grid + padding path.
    batch2 = 300
    x2 = jax.random.normal(kx2, (batch2, INPUT_DIM), jnp.float32)
    out2 = lipschitz_nn_forward(x2, w1, b1, w2, b2, w3, b3, tile_b=128)
    out2 = jax.block_until_ready(out2)
    ref2 = reference_forward(x2, w1, b1, w2, b2, w3, b3)
    assert out2.shape == (batch2, OUTPUT_DIM)
    assert jnp.allclose(out2, ref2, atol=1e-5, rtol=1e-5), (
        f"mismatch (tiled): max abs err {jnp.max(jnp.abs(out2 - ref2))}")

    print("KERNEL_OK")
</pallas_src>

<mosaic_0001>
module attributes {stable_mosaic.version = 11 : i64} {
  func.func @_mlp_kernel(%arg0: i32, %arg1: memref<12x128xf32, #tpu.memory_space<vmem>>, %arg2: memref<32x12xf32, #tpu.memory_space<vmem>>, %arg3: memref<32x1xf32, #tpu.memory_space<vmem>>, %arg4: memref<16x32xf32, #tpu.memory_space<vmem>>, %arg5: memref<16x1xf32, #tpu.memory_space<vmem>>, %arg6: memref<5x16xf32, #tpu.memory_space<vmem>>, %arg7: memref<5x1xf32, #tpu.memory_space<vmem>>, %arg8: memref<5x128xf32, #tpu.memory_space<vmem>>) attributes {dimension_semantics = [#tpu.dimension_semantics<parallel>], iteration_bounds = array<i64: 1>, scalar_prefetch = 0 : i64, scratch_operands = 0 : i64, tpu.core_type = #tpu.core_type<tc>, window_params = [{transform_indices = @transform_0, window_bounds = array<i64: 12, 128>}, {pipeline_mode = #tpu.pipeline_mode<synchronous>, transform_indices = @transform_1, window_bounds = array<i64: 32, 12>}, {pipeline_mode = #tpu.pipeline_mode<synchronous>, transform_indices = @transform_2, window_bounds = array<i64: 32, 1>}, {pipeline_mode = #tpu.pipeline_mode<synchronous>, transform_indices = @transform_3, window_bounds = array<i64: 16, 32>}, {pipeline_mode = #tpu.pipeline_mode<synchronous>, transform_indices = @transform_4, window_bounds = array<i64: 16, 1>}, {pipeline_mode = #tpu.pipeline_mode<synchronous>, transform_indices = @transform_5, window_bounds = array<i64: 5, 16>}, {pipeline_mode = #tpu.pipeline_mode<synchronous>, transform_indices = @transform_6, window_bounds = array<i64: 5, 1>}, {transform_indices = @transform_7, window_bounds = array<i64: 5, 128>}]} {
    %c0 = arith.constant 0 : index
    %c0_0 = arith.constant 0 : index
    %0 = vector.load %arg1[%c0, %c0_0] : memref<12x128xf32, #tpu.memory_space<vmem>>, vector<12x128xf32>
    %c0_1 = arith.constant 0 : index
    %c0_2 = arith.constant 0 : index
    %1 = vector.load %arg2[%c0_1, %c0_2] : memref<32x12xf32, #tpu.memory_space<vmem>>, vector<32x12xf32>
    %cst = arith.constant dense<0.000000e+00> : vector<32x128xf32>
    %2 = tpu.matmul %1, %0, %cst {dimension_numbers = #tpu.dot_dimension_numbers<[1], [0], [0], [1], [0, 0, 1, 1], [], []>} : vector<32x12xf32>, vector<12x128xf32>, vector<32x128xf32> -> vector<32x128xf32>
    %c0_3 = arith.constant 0 : index
    %c0_4 = arith.constant 0 : index
    %3 = vector.load %arg3[%c0_3, %c0_4] : memref<32x1xf32, #tpu.memory_space<vmem>>, vector<32x1xf32>
    %4 = vector.broadcast %3 : vector<32x1xf32> to vector<32x128xf32>
    %5 = arith.addf %2, %4 : vector<32x128xf32>
    %cst_5 = arith.constant 5.000000e-01 : f32
    %6 = vector.broadcast %cst_5 : f32 to vector<32x128xf32>
    %7 = arith.mulf %6, %5 : vector<32x128xf32>
    %cst_6 = arith.constant 0.707106769 : f32
    %8 = vector.broadcast %cst_6 : f32 to vector<32x128xf32>
    %9 = arith.mulf %5, %8 : vector<32x128xf32>
    %10 = math.erf %9 : vector<32x128xf32>
    %cst_7 = arith.constant 1.000000e+00 : f32
    %11 = vector.broadcast %cst_7 : f32 to vector<32x128xf32>
    %12 = arith.addf %11, %10 : vector<32x128xf32>
    %13 = arith.mulf %7, %12 : vector<32x128xf32>
    %c0_8 = arith.constant 0 : index
    %c0_9 = arith.constant 0 : index
    %14 = vector.load %arg4[%c0_8, %c0_9] : memref<16x32xf32, #tpu.memory_space<vmem>>, vector<16x32xf32>
    %cst_10 = arith.constant dense<0.000000e+00> : vector<16x128xf32>
    %15 = tpu.matmul %14, %13, %cst_10 {dimension_numbers = #tpu.dot_dimension_numbers<[1], [0], [0], [1], [0, 0, 1, 1], [], []>} : vector<16x32xf32>, vector<32x128xf32>, vector<16x128xf32> -> vector<16x128xf32>
    %c0_11 = arith.constant 0 : index
    %c0_12 = arith.constant 0 : index
    %16 = vector.load %arg5[%c0_11, %c0_12] : memref<16x1xf32, #tpu.memory_space<vmem>>, vector<16x1xf32>
    %17 = vector.broadcast %16 : vector<16x1xf32> to vector<16x128xf32>
    %18 = arith.addf %15, %17 : vector<16x128xf32>
    %cst_13 = arith.constant 5.000000e-01 : f32
    %19 = vector.broadcast %cst_13 : f32 to vector<16x128xf32>
    %20 = arith.mulf %19, %18 : vector<16x128xf32>
    %cst_14 = arith.constant 0.707106769 : f32
    %21 = vector.broadcast %cst_14 : f32 to vector<16x128xf32>
    %22 = arith.mulf %18, %21 : vector<16x128xf32>
    %23 = math.erf %22 : vector<16x128xf32>
    %cst_15 = arith.constant 1.000000e+00 : f32
    %24 = vector.broadcast %cst_15 : f32 to vector<16x128xf32>
    %25 = arith.addf %24, %23 : vector<16x128xf32>
    %26 = arith.mulf %20, %25 : vector<16x128xf32>
    %c0_16 = arith.constant 0 : index
    %c0_17 = arith.constant 0 : index
    %27 = vector.load %arg6[%c0_16, %c0_17] : memref<5x16xf32, #tpu.memory_space<vmem>>, vector<5x16xf32>
    %cst_18 = arith.constant dense<0.000000e+00> : vector<5x128xf32>
    %28 = tpu.matmul %27, %26, %cst_18 {dimension_numbers = #tpu.dot_dimension_numbers<[1], [0], [0], [1], [0, 0, 1, 1], [], []>} : vector<5x16xf32>, vector<16x128xf32>, vector<5x128xf32> -> vector<5x128xf32>
    %c0_19 = arith.constant 0 : index
    %c0_20 = arith.constant 0 : index
    %29 = vector.load %arg7[%c0_19, %c0_20] : memref<5x1xf32, #tpu.memory_space<vmem>>, vector<5x1xf32>
    %30 = vector.broadcast %29 : vector<5x1xf32> to vector<5x128xf32>
    %31 = arith.addf %28, %30 : vector<5x128xf32>
    %c0_21 = arith.constant 0 : index
    %c0_22 = arith.constant 0 : index
    %32 = vector.load %arg8[%c0_21, %c0_22] : memref<5x128xf32, #tpu.memory_space<vmem>>, vector<5x128xf32>
    tpu.vector_store %arg8[%c0_21, %c0_22], %31 {strides = array<i32>} : memref<5x128xf32, #tpu.memory_space<vmem>>, vector<5x128xf32>,
    return
  }
  func.func @transform_0(%arg0: i32) -> (i32, i32) {
    %c0_i32 = arith.constant 0 : i32
    %c0_i32_0 = arith.constant 0 : i32
    return %c0_i32, %arg0 : i32, i32
  }
  func.func @transform_1(%arg0: i32) -> (i32, i32) {
    %c0_i32 = arith.constant 0 : i32
    %c0_i32_0 = arith.constant 0 : i32
    %c0_i32_1 = arith.constant 0 : i32
    return %c0_i32, %c0_i32_0 : i32, i32
  }
  func.func @transform_2(%arg0: i32) -> (i32, i32) {
    %c0_i32 = arith.constant 0 : i32
    %c0_i32_0 = arith.constant 0 : i32
    %c0_i32_1 = arith.constant 0 : i32
    return %c0_i32, %c0_i32_0 : i32, i32
  }
  func.func @transform_3(%arg0: i32) -> (i32, i32) {
    %c0_i32 = arith.constant 0 : i32
    %c0_i32_0 = arith.constant 0 : i32
    %c0_i32_1 = arith.constant 0 : i32
    return %c0_i32, %c0_i32_0 : i32, i32
  }
  func.func @transform_4(%arg0: i32) -> (i32, i32) {
    %c0_i32 = arith.constant 0 : i32
    %c0_i32_0 = arith.constant 0 : i32
    %c0_i32_1 = arith.constant 0 : i32
    return %c0_i32, %c0_i32_0 : i32, i32
  }
  func.func @transform_5(%arg0: i32) -> (i32, i32) {
    %c0_i32 = arith.constant 0 : i32
    %c0_i32_0 = arith.constant 0 : i32
    %c0_i32_1 = arith.constant 0 : i32
    return %c0_i32, %c0_i32_0 : i32, i32
  }
  func.func @transform_6(%arg0: i32) -> (i32, i32) {
    %c0_i32 = arith.constant 0 : i32
    %c0_i32_0 = arith.constant 0 : i32
    %c0_i32_1 = arith.constant 0 : i32
    return %c0_i32, %c0_i32_0 : i32, i32
  }
  func.func @transform_7(%arg0: i32) -> (i32, i32) {
    %c0_i32 = arith.constant 0 : i32
    %c0_i32_0 = arith.constant 0 : i32
    return %c0_i32, %arg0 : i32, i32
  }
}

</mosaic_0001>

<llo_original>
// kernel: lipschitz_nn_forward.1
$region0: #{lipschitz_nn_forward.1}
  #allocation0 [shape = 'u32[]', space=smem, size = 0x4, offset = 0x4, fixed_abs, tag = 'smem constant byte address 0x4 - core index']
  #allocation1 [shape = 'u32[144,128]{1,0:T(1,128)}', space=vmem, size = 0x12000, scoped, tag = 'internal scratch']
  %s0 = inlined_call_operand.vmem [shape: f32[12,128], index: 0, kind: input, shape index: {}]
  %s1 = inlined_call_operand.vmem [shape: f32[32,12], index: 1, kind: input, shape index: {}]
  %s2 = inlined_call_operand.vmem [shape: f32[32,1], index: 2, kind: input, shape index: {}]
  %s3 = inlined_call_operand.vmem [shape: f32[16,32], index: 3, kind: input, shape index: {}]
  %s4 = inlined_call_operand.vmem [shape: f32[16,1], index: 4, kind: input, shape index: {}]
  %s5 = inlined_call_operand.vmem [shape: f32[5,16], index: 5, kind: input, shape index: {}]
  %s6 = inlined_call_operand.vmem [shape: f32[5,1], index: 6, kind: input, shape index: {}]
  %s7 = inlined_call_operand.vmem [shape: f32[5,128], index: 7, kind: output, shape index: {}]
  %s8 = sld [smem:[#allocation0]]
  $region38: #{lipschitz_nn_forward.1} parent=0
    _
  %s10 = ssub.s32 1, %s8
  %s11 = scalar_select 0, %s10, %s8
  // Predicated region
  $region2: #{lipschitz_nn_forward.1} parent=0 // pred_check
    _
  $region3: #{lipschitz_nn_forward.1} parent=0 // pred_check_branch
    %13 = sbr.rel (0) target = $region5
  $region4: #{lipschitz_nn_forward.1} parent=0 // pred_region
    _
  $region5: #{lipschitz_nn_forward.1} parent=0 // pred_fallthru
    _
  // Predicated region
  $region6: #{lipschitz_nn_forward.1} parent=0 // pred_check
    _
  $region7: #{lipschitz_nn_forward.1} parent=0 // pred_check_branch
    %15 = sbr.rel (0) target = $region9
  $region8: #{lipschitz_nn_forward.1} parent=0 // pred_region
    _
  $region9: #{lipschitz_nn_forward.1} parent=0 // pred_fallthru
    _
  // Predicated region
  $region10: #{lipschitz_nn_forward.1} parent=0 // pred_check
    _
  $region11: #{lipschitz_nn_forward.1} parent=0 // pred_check_branch
    %17 = sbr.rel (0) target = $region13
  $region12: #{lipschitz_nn_forward.1} parent=0 // pred_region
    _
  $region13: #{lipschitz_nn_forward.1} parent=0 // pred_fallthru
    _
  // Predicated region
  $region14: #{lipschitz_nn_forward.1} parent=0 // pred_check
    _
  $region15: #{lipschitz_nn_forward.1} parent=0 // pred_check_branch
    %19 = sbr.rel (0) target = $region17
  $region16: #{lipschitz_nn_forward.1} parent=0 // pred_region
    _
  $region17: #{lipschitz_nn_forward.1} parent=0 // pred_fallthru
    _
  // Predicated region
  $region18: #{lipschitz_nn_forward.1} parent=0 // pred_check
    _
  $region19: #{lipschitz_nn_forward.1} parent=0 // pred_check_branch
    %21 = sbr.rel (0) target = $region21
  $region20: #{lipschitz_nn_forward.1} parent=0 // pred_region
    _
  $region21: #{lipschitz_nn_forward.1} parent=0 // pred_fallthru
    _
  // Predicated region
  $region22: #{lipschitz_nn_forward.1} parent=0 // pred_check
    _
  $region23: #{lipschitz_nn_forward.1} parent=0 // pred_check_branch
    %23 = sbr.rel (0) target = $region25
  $region24: #{lipschitz_nn_forward.1} parent=0 // pred_region
    _
  $region25: #{lipschitz_nn_forward.1} parent=0 // pred_fallthru
    _
  // Predicated region
  $region26: #{lipschitz_nn_forward.1} parent=0 // pred_check
    _
  $region27: #{lipschitz_nn_forward.1} parent=0 // pred_check_branch
    %25 = sbr.rel (0) target = $region29
  $region28: #{lipschitz_nn_forward.1} parent=0 // pred_region
    _
  $region29: #{lipschitz_nn_forward.1} parent=0 // pred_fallthru
    _
  %v26 = vld [vmem:[%s0] sm:$0xff]
  %v27 = vld [vmem:[%s0 + $0x8] sm:$0xf]
  %v28 = vld [vmem:[%s1] sm:$0xff]
  %v29 = vld [vmem:[%s1 + $0x8] sm:$0xff]
  %v30 = vld [vmem:[%s1 + $0x10] sm:$0xff]
  %v31 = vld [vmem:[%s1 + $0x18] sm:$0xff]
  %v32 = vld [vmem:[%s2] sm:$0xff]
  %v33 = vld [vmem:[%s2 + $0x8] sm:$0xff]
  %v34 = vld [vmem:[%s2 + $0x10] sm:$0xff]
  %v35 = vld [vmem:[%s2 + $0x18] sm:$0xff]
  %37 = vset.pattern.permute.xlu0 0
  %38 = vperm.xlu0 %37, %v32
  %v39 = vpop.permute.xlu0 %38
  %42 = vset.pattern.permute.xlu0 0
  %43 = vperm.xlu0 %42, %v33
  %v44 = vpop.permute.xlu0 %43
  %47 = vset.pattern.permute.xlu0 0
  %48 = vperm.xlu0 %47, %v34
  %v49 = vpop.permute.xlu0 %48
  %52 = vset.pattern.permute.xlu0 0
  %53 = vperm.xlu0 %52, %v35
  %v54 = vpop.permute.xlu0 %53
  %vm56 = vcmask 97280
  %v58 = vsel %vm56, %v28, 0
  %v61 = vsel %vm56, %v29, 0
  %v64 = vsel %vm56, %v30, 0
  %v67 = vsel %vm56, %v31, 0
  %vm69 = vcmask 1043456
  %v71 = vsel %vm69, %v27, 0
  %73 = vmatprep.subr.mxu0 0.0
  %74 = vmatpush1.msra.mxu0 %v26
  %75 = vmatprep.subr.mxu0 0.0
  %76 = vmatpush1.msra.mxu0 %v71
  %77 = vmatprep.subr.mxu0 0.0
  %78 = vmatpush1.msra.mxu0 0.0
  %79 = vmatprep.subr.mxu0 0.0
  %80 = vmatpush1.msra.mxu0 0.0
  %81 = vmatprep.subr.mxu0 0.0
  %82 = vmatpush1.msra.mxu0 0.0
  %83 = vmatprep.subr.mxu0 0.0
  %84 = vmatpush1.msra.mxu0 0.0
  %85 = vmatprep.subr.mxu0 0.0
  %86 = vmatpush1.msra.mxu0 0.0
  %87 = vmatprep.subr.mxu0 0.0
  %88 = vmatpush1.msra.mxu0 0.0
  %89 = vmatprep.subr.mxu0 0.0
  %90 = vmatpush1.msra.mxu0 0.0
  %91 = vmatprep.subr.mxu0 0.0
  %92 = vmatpush1.msra.mxu0 0.0
  %93 = vmatprep.subr.mxu0 0.0
  %94 = vmatpush1.msra.mxu0 0.0
  %95 = vmatprep.subr.mxu0 0.0
  %96 = vmatpush1.msra.mxu0 0.0
  %97 = vmatprep.subr.mxu0 0.0
  %98 = vmatpush1.msra.mxu0 0.0
  %99 = vmatprep.subr.mxu0 0.0
  %100 = vmatpush1.msra.mxu0 0.0
  %101 = vmatprep.subr.mxu0 0.0
  %102 = vmatpush1.msra.mxu0 0.0
  %103 = vmatprep.subr.mxu0 0.0
  %104 = vmatpush1.msra.mxu0 0.0
  %105 = vmatprep.subr.mxu0 0.0
  %106 = vmatpush1.msra.mxu0 0.0
  %107 = vmatprep.subr.mxu0 0.0
  %108 = vmatpush1.msra.mxu0 0.0
  %109 = vmatprep.subr.mxu0 0.0
  %110 = vmatpush1.msra.mxu0 0.0
  %111 = vmatprep.subr.mxu0 0.0
  %112 = vmatpush1.msra.mxu0 0.0
  %113 = vmatprep.subr.mxu0 0.0
  %114 = vmatpush1.msra.mxu0 0.0
  %115 = vmatprep.subr.mxu0 0.0
  %116 = vmatpush1.msra.mxu0 0.0
  %117 = vmatprep.subr.mxu0 0.0
  %118 = vmatpush1.msra.mxu0 0.0
  %119 = vmatprep.subr.mxu0 0.0
  %120 = vmatpush1.msra.mxu0 0.0
  %121 = vmatprep.subr.mxu0 0.0
  %122 = vmatpush1.msra.mxu0 0.0
  %123 = vmatprep.subr.mxu0 0.0
  %124 = vmatpush1.msra.mxu0 0.0
  %125 = vmatprep.subr.mxu0 0.0
  %126 = vmatpush1.msra.mxu0 0.0
  %127 = vmatprep.subr.mxu0 0.0
  %128 = vmatpush1.msra.mxu0 0.0
  %129 = vmatprep.subr.mxu0 0.0
  %130 = vmatpush1.msra.mxu0 0.0
  %131 = vmatprep.subr.mxu0 0.0
  %132 = vmatpush1.msra.mxu0 0.0
  %133 = vmatprep.subr.mxu0 0.0
  %134 = vmatpush1.msra.mxu0 0.0
  %135 = vmatprep.subr.mxu0 0.0
  %136 = vmatpush1.msra.mxu0 0.0
  %137 = vmatprep.mubr.f32.mxu0 0.0
  %138 = vmatmul.mubr.f32.gmra.mrb[0].mxu0 %v58
  %v139 = vpop.f32.mrb[0].mxu0
  %v140 = vadd.f32 %v39, %v139
  %v141 = vpop.f32.mrb[0].mxu0
  %142 = vmatprep.mubr.f32.mxu0 0.0
  %143 = vmatmul.mubr.f32.gmra.mrb[0].mxu0 %v61
  %v144 = vpop.f32.mrb[0].mxu0
  %v145 = vadd.f32 %v44, %v144
  %v146 = vpop.f32.mrb[0].mxu0
  %147 = vmatprep.mubr.f32.mxu0 0.0
  %148 = vmatmul.mubr.f32.gmra.mrb[0].mxu0 %v64
  %v149 = vpop.f32.mrb[0].mxu0
  %v150 = vadd.f32 %v49, %v149
  %v151 = vpop.f32.mrb[0].mxu0
  %152 = vmatprep.mubr.f32.mxu0 0.0
  %153 = vmatmul.mubr.f32.gmra.mrb[0].mxu0 %v67
  %v154 = vpop.f32.mrb[0].mxu0
  %v155 = vadd.f32 %v54, %v154
  %v156 = vpop.f32.mrb[0].mxu0
  %157 = vdwg.mxu0
  %v158 = vmul.f32 %v140, 0.5
  %v159 = vmul.f32 %v145, 0.5
  %v160 = vmul.f32 %v150, 0.5
  %v161 = vmul.f32 %v155, 0.5
  %v162 = vmul.f32 %v140, 0.70710677
  %v163 = vmul.f32 %v145, 0.70710677
  %v164 = vmul.f32 %v150, 0.70710677
  %v165 = vmul.f32 %v155, 0.70710677
  %v166 = verf.f32.pop %v162
  %v167 = verf.f32.pop %v163
  %v168 = verf.f32.pop %v164
  %v169 = verf.f32.pop %v165
  %v170 = vadd.f32 %v166, 1.0
  %v171 = vadd.f32 %v167, 1.0
  %v172 = vadd.f32 %v168, 1.0
  %v173 = vadd.f32 %v169, 1.0
  %v174 = vmul.f32 %v158, %v170
  %v175 = vmul.f32 %v159, %v171
  %v176 = vmul.f32 %v160, %v172
  %v177 = vmul.f32 %v161, %v173
  %v178 = vld [vmem:[%s3] sm:$0xff]
  %v179 = vld [vmem:[%s3 + $0x8] sm:$0xff]
  %v180 = vld [vmem:[%s4] sm:$0xff]
  %v181 = vld [vmem:[%s4 + $0x8] sm:$0xff]
  %183 = vset.pattern.permute.xlu0 0
  %184 = vperm.xlu0 %183, %v180
  %v185 = vpop.permute.xlu0 %184
  %188 = vset.pattern.permute.xlu0 0
  %189 = vperm.xlu0 %188, %v181
  %v190 = vpop.permute.xlu0 %189
  %vm192 = vcmask 261120
  %v194 = vsel %vm192, %v178, 0
  %v197 = vsel %vm192, %v179, 0
  %199 = vmatprep.subr.mxu0 0.0
  %200 = vmatpush1.msra.mxu0 %v174
  %201 = vmatprep.subr.mxu0 0.0
  %202 = vmatpush1.msra.mxu0 %v175
  %203 = vmatprep.subr.mxu0 0.0
  %204 = vmatpush1.msra.mxu0 %v176
  %205 = vmatprep.subr.mxu0 0.0
  %206 = vmatpush1.msra.mxu0 %v177
  %207 = vmatprep.subr.mxu0 0.0
  %208 = vmatpush1.msra.mxu0 0.0
  %209 = vmatprep.subr.mxu0 0.0
  %210 = vmatpush1.msra.mxu0 0.0
  %211 = vmatprep.subr.mxu0 0.0
  %212 = vmatpush1.msra.mxu0 0.0
  %213 = vmatprep.subr.mxu0 0.0
  %214 = vmatpush1.msra.mxu0 0.0
  %215 = vmatprep.subr.mxu0 0.0
  %216 = vmatpush1.msra.mxu0 0.0
  %217 = vmatprep.subr.mxu0 0.0
  %218 = vmatpush1.msra.mxu0 0.0
  %219 = vmatprep.subr.mxu0 0.0
  %220 = vmatpush1.msra.mxu0 0.0
  %221 = vmatprep.subr.mxu0 0.0
  %222 = vmatpush1.msra.mxu0 0.0
  %223 = vmatprep.subr.mxu0 0.0
  %224 = vmatpush1.msra.mxu0 0.0
  %225 = vmatprep.subr.mxu0 0.0
  %226 = vmatpush1.msra.mxu0 0.0
  %227 = vmatprep.subr.mxu0 0.0
  %228 = vmatpush1.msra.mxu0 0.0
  %229 = vmatprep.subr.mxu0 0.0
  %230 = vmatpush1.msra.mxu0 0.0
  %231 = vmatprep.subr.mxu0 0.0
  %232 = vmatpush1.msra.mxu0 0.0
  %233 = vmatprep.subr.mxu0 0.0
  %234 = vmatpush1.msra.mxu0 0.0
  %235 = vmatprep.subr.mxu0 0.0
  %236 = vmatpush1.msra.mxu0 0.0
  %237 = vmatprep.subr.mxu0 0.0
  %238 = vmatpush1.msra.mxu0 0.0
  %239 = vmatprep.subr.mxu0 0.0
  %240 = vmatpush1.msra.mxu0 0.0
  %241 = vmatprep.subr.mxu0 0.0
  %242 = vmatpush1.msra.mxu0 0.0
  %243 = vmatprep.subr.mxu0 0.0
  %244 = vmatpush1.msra.mxu0 0.0
  %245 = vmatprep.subr.mxu0 0.0
  %246 = vmatpush1.msra.mxu0 0.0
  %247 = vmatprep.subr.mxu0 0.0
  %248 = vmatpush1.msra.mxu0 0.0
  %249 = vmatprep.subr.mxu0 0.0
  %250 = vmatpush1.msra.mxu0 0.0
  %251 = vmatprep.subr.mxu0 0.0
  %252 = vmatpush1.msra.mxu0 0.0
  %253 = vmatprep.subr.mxu0 0.0
  %254 = vmatpush1.msra.mxu0 0.0
  %255 = vmatprep.subr.mxu0 0.0
  %256 = vmatpush1.msra.mxu0 0.0
  %257 = vmatprep.subr.mxu0 0.0
  %258 = vmatpush1.msra.mxu0 0.0
  %259 = vmatprep.subr.mxu0 0.0
  %260 = vmatpush1.msra.mxu0 0.0
  %261 = vmatprep.subr.mxu0 0.0
  %262 = vmatpush1.msra.mxu0 0.0
  %263 = vmatprep.mubr.f32.mxu0 0.0
  %264 = vmatmul.mubr.f32.gmra.mrb[0].mxu0 %v194
  %v265 = vpop.f32.mrb[0].mxu0
  %v266 = vadd.f32 %v185, %v265
  %v267 = vpop.f32.mrb[0].mxu0
  %268 = vmatprep.mubr.f32.mxu0 0.0
  %269 = vmatmul.mubr.f32.gmra.mrb[0].mxu0 %v197
  %v270 = vpop.f32.mrb[0].mxu0
  %v271 = vadd.f32 %v190, %v270
  %v272 = vpop.f32.mrb[0].mxu0
  %273 = vdwg.mxu0
  %v274 = vmul.f32 %v266, 0.5
  %v275 = vmul.f32 %v271, 0.5
  %v276 = vmul.f32 %v266, 0.70710677
  %v277 = vmul.f32 %v271, 0.70710677
  %v278 = verf.f32.pop %v276
  %v279 = verf.f32.pop %v277
  %v280 = vadd.f32 %v278, 1.0
  %v281 = vadd.f32 %v279, 1.0
  %v282 = vmul.f32 %v274, %v280
  %v283 = vmul.f32 %v275, %v281
  %v284 = vld [vmem:[%s5] sm:$0x1f]
  %v285 = vld [vmem:[%s6] sm:$0x1f]
  %287 = vset.pattern.permute.xlu0 0
  %288 = vperm.xlu0 %287, %v285
  %v289 = vpop.permute.xlu0 %288
  %vm291 = vcmask 130048
  %v293 = vsel %vm291, %v284, 0
  %295 = vmatprep.subr.mxu0 0.0
  %296 = vmatpush1.msra.mxu0 %v282
  %297 = vmatprep.subr.mxu0 0.0
  %298 = vmatpush1.msra.mxu0 %v283
  %299 = vmatprep.subr.mxu0 0.0
  %300 = vmatpush1.msra.mxu0 0.0
  %301 = vmatprep.subr.mxu0 0.0
  %302 = vmatpush1.msra.mxu0 0.0
  %303 = vmatprep.subr.mxu0 0.0
  %304 = vmatpush1.msra.mxu0 0.0
  %305 = vmatprep.subr.mxu0 0.0
  %306 = vmatpush1.msra.mxu0 0.0
  %307 = vmatprep.subr.mxu0 0.0
  %308 = vmatpush1.msra.mxu0 0.0
  %309 = vmatprep.subr.mxu0 0.0
  %310 = vmatpush1.msra.mxu0 0.0
  %311 = vmatprep.subr.mxu0 0.0
  %312 = vmatpush1.msra.mxu0 0.0
  %313 = vmatprep.subr.mxu0 0.0
  %314 = vmatpush1.msra.mxu0 0.0
  %315 = vmatprep.subr.mxu0 0.0
  %316 = vmatpush1.msra.mxu0 0.0
  %317 = vmatprep.subr.mxu0 0.0
  %318 = vmatpush1.msra.mxu0 0.0
  %319 = vmatprep.subr.mxu0 0.0
  %320 = vmatpush1.msra.mxu0 0.0
  %321 = vmatprep.subr.mxu0 0.0
  %322 = vmatpush1.msra.mxu0 0.0
  %323 = vmatprep.subr.mxu0 0.0
  %324 = vmatpush1.msra.mxu0 0.0
  %325 = vmatprep.subr.mxu0 0.0
  %326 = vmatpush1.msra.mxu0 0.0
  %327 = vmatprep.subr.mxu0 0.0
  %328 = vmatpush1.msra.mxu0 0.0
  %329 = vmatprep.subr.mxu0 0.0
  %330 = vmatpush1.msra.mxu0 0.0
  %331 = vmatprep.subr.mxu0 0.0
  %332 = vmatpush1.msra.mxu0 0.0
  %333 = vmatprep.subr.mxu0 0.0
  %334 = vmatpush1.msra.mxu0 0.0
  %335 = vmatprep.subr.mxu0 0.0
  %336 = vmatpush1.msra.mxu0 0.0
  %337 = vmatprep.subr.mxu0 0.0
  %338 = vmatpush1.msra.mxu0 0.0
  %339 = vmatprep.subr.mxu0 0.0
  %340 = vmatpush1.msra.mxu0 0.0
  %341 = vmatprep.subr.mxu0 0.0
  %342 = vmatpush1.msra.mxu0 0.0
  %343 = vmatprep.subr.mxu0 0.0
  %344 = vmatpush1.msra.mxu0 0.0
  %345 = vmatprep.subr.mxu0 0.0
  %346 = vmatpush1.msra.mxu0 0.0
  %347 = vmatprep.subr.mxu0 0.0
  %348 = vmatpush1.msra.mxu0 0.0
  %349 = vmatprep.subr.mxu0 0.0
  %350 = vmatpush1.msra.mxu0 0.0
  %351 = vmatprep.subr.mxu0 0.0
  %352 = vmatpush1.msra.mxu0 0.0
  %353 = vmatprep.subr.mxu0 0.0
  %354 = vmatpush1.msra.mxu0 0.0
  %355 = vmatprep.subr.mxu0 0.0
  %356 = vmatpush1.msra.mxu0 0.0
  %357 = vmatprep.subr.mxu0 0.0
  %358 = vmatpush1.msra.mxu0 0.0
  %359 = vmatprep.mubr.f32.mxu0 0.0
  %360 = vmatmul.mubr.f32.gmra.mrb[0].mxu0 %v293
  %v361 = vpop.f32.mrb[0].mxu0
  %v362 = vadd.f32 %v289, %v361
  %v363 = vpop.f32.mrb[0].mxu0
  %364 = vdwg.mxu0
  %365 = vst [vmem:[%s7] sm:$0x1f] %v362
  // Predicated region
  $region30: #{lipschitz_nn_forward.1} parent=0 // pred_check
    _
  $region31: #{lipschitz_nn_forward.1} parent=0 // pred_check_branch
    %367 = sbr.rel (0) target = $region33
  $region32: #{lipschitz_nn_forward.1} parent=0 // pred_region
    _
  $region33: #{lipschitz_nn_forward.1} parent=0 // pred_fallthru
    _
  // Predicated region
  $region34: #{lipschitz_nn_forward.1} parent=0 // pred_check
    _
  $region35: #{lipschitz_nn_forward.1} parent=0 // pred_check_branch
    %369 = sbr.rel (0) target = $region37
  $region36: #{lipschitz_nn_forward.1} parent=0 // pred_region
    _
  $region37: #{lipschitz_nn_forward.1} parent=0 // pred_fallthru
    _

</llo_original>
